<compile_context>
chip_gen: v5e
topology: v5e:2x2
jax: 0.10.0
libtpu: 0.0.40
codegen_flags: <defaults>
</compile_context>

<pallas_src>
import functools

import jax
import jax.numpy as jnp
from jax.experimental import pallas as pl

BN_EPS = 1e-5


def _fused_xc_kernel(x_ref, w_ref, b_ref, o_ref, *, layer_cfgs):
    """Entire XcPredictor forward in one kernel invocation.

    x_ref : (B, proteomics_dim)            f32
    w_ref : (n_layers, max_in, max_out)    bf16  (zero-padded weight slab)
    b_ref : (n_bias,   max_out)            f32   (surviving biases only)
    o_ref : (B, clinical_dim)              f32

    layer_cfgs: static tuple of
        (in_dim, out_dim, bias_row_or_None, use_bn, add_residual, is_output)
    """
    x = x_ref[...]                      # f32 activation, VMEM-resident throughout
    inv_n = 1.0 / x.shape[0]            # static batch size

    for li, (in_dim, out_dim, bias_row, use_bn, add_res, is_out) in enumerate(layer_cfgs):
        # Static slice of the packed weight slab: zero-cost view.
        w = w_ref[li, 0:in_dim, 0:out_dim]
        # Linear on the MXU: bf16 operands, f32 accumulation.
        y = jnp.dot(x.astype(jnp.bfloat16), w,
                    preferred_element_type=jnp.float32)
        if bias_row is not None:
            # Only non-BN layers keep their bias (BN cancels it exactly).
            y = y + b_ref[bias_row:bias_row + 1, 0:out_dim]

        if use_bn:
            # BatchNorm1d (training mode): batch mean, biased batch variance.
            # Single fused cross-sublane reduction over [y | y*y].
            # Default-init affine (gamma=1, beta=0) is an identity -> skipped.
            s = jnp.sum(jnp.concatenate([y, y * y], axis=-1),
                        axis=0, keepdims=True)
            mean = s[:, 0:out_dim] * inv_n
            var = s[:, out_dim:2 * out_dim] * inv_n - mean * mean
            y = (y - mean) * jax.lax.rsqrt(var + BN_EPS)

        if is_out:
            o_ref[...] = jax.nn.sigmoid(y)
        else:
            y = jnp.maximum(y, 0.0)     # ReLU
            if add_res:                 # only when in_dim == out_dim
                y = y + x
            x = y


def _full_spec(shape):
    # Whole-array block (no grid); everything resident in VMEM.
    return pl.BlockSpec(shape, lambda: (0,) * len(shape))


def xc_predictor_forward(params, xp):
    """Single fused pallas_call for the whole network."""
    batch, proteomics_dim = xp.shape
    # Training-mode BN with batch size 1 is an error in PyTorch; guard it here.
    assert batch > 1, "training-mode BatchNorm1d requires batch > 1"

    blocks = params["blocks"]
    clinical_dim = params["w_out"].shape[1]

    # ---- pack all parameters into exactly two buffers ----------------------
    layer_ws = [blk["w"] for blk in blocks] + [params["w_out"]]
    max_in = max(w.shape[0] for w in layer_ws)
    max_out = max(w.shape[1] for w in layer_ws)

    w_packed = jnp.zeros((len(layer_ws), max_in, max_out), jnp.bfloat16)
    for i, w in enumerate(layer_ws):
        w_packed = w_packed.at[i, :w.shape[0], :w.shape[1]].set(w)

    bias_rows = []
    layer_cfgs = []
    in_dim = proteomics_dim
    for blk in blocks:
        out_dim = blk["w"].shape[1]
        if blk["use_bn"]:
            bias_row = None             # mathematically dead under training BN
        else:
            bias_row = len(bias_rows)
            bias_rows.append(blk["b"].reshape(-1))
        layer_cfgs.append((in_dim, out_dim, bias_row, blk["use_bn"],
                           blk["add_residual"], False))
        in_dim = out_dim
    # final Linear (+ sigmoid): always has a bias, never BN / ReLU / residual
    bias_row = len(bias_rows)
    bias_rows.append(params["b_out"].reshape(-1))
    layer_cfgs.append((in_dim, clinical_dim, bias_row, False, False, True))

    b_packed = jnp.zeros((len(bias_rows), max_out), jnp.float32)
    for i, b in enumerate(bias_rows):
        b_packed = b_packed.at[i, :b.shape[0]].set(b)

    # ---- single fused kernel call ------------------------------------------
    kernel = functools.partial(_fused_xc_kernel, layer_cfgs=tuple(layer_cfgs))
    return pl.pallas_call(
        kernel,
        out_shape=jax.ShapeDtypeStruct((batch, clinical_dim), jnp.float32),
        in_specs=[_full_spec(xp.shape),
                  _full_spec(w_packed.shape),
                  _full_spec(b_packed.shape)],
        out_specs=_full_spec((batch, clinical_dim)),
    )(xp, w_packed, b_packed)


def init_xc_predictor_params(key, proteomics_dim, clinical_dim, hidden_dims):
    """Deterministic params mimicking PyTorch default Linear init.

    Weights are stored transposed as (in, out) and in bf16 (MXU-native);
    biases stay f32.  BN affine params (gamma=1, beta=0) are folded away.
    BN-layer biases are still drawn (RNG parity) but never reach the kernel.
    """
    params = {"blocks": []}
    in_dim = proteomics_dim
    for h_dim in hidden_dims:
        key, kw, kb = jax.random.split(key, 3)
        bound = 1.0 / (in_dim ** 0.5)
        w = jax.random.uniform(kw, (in_dim, h_dim), jnp.float32, -bound, bound)
        b = jax.random.uniform(kb, (1, h_dim), jnp.float32, -bound, bound)
        params["blocks"].append({
            "w": w.astype(jnp.bfloat16),
            "b": b,
            "add_residual": in_dim == h_dim,   # PyTorch: residual iff shapes match
            "use_bn": h_dim > 1,               # PyTorch: Identity when output_dim == 1
        })
        in_dim = h_dim
    key, kw, kb = jax.random.split(key, 3)
    bound = 1.0 / (hidden_dims[-1] ** 0.5)
    params["w_out"] = jax.random.uniform(
        kw, (hidden_dims[-1], clinical_dim), jnp.float32, -bound, bound
    ).astype(jnp.bfloat16)
    params["b_out"] = jax.random.uniform(
        kb, (1, clinical_dim), jnp.float32, -bound, bound)
    return params


if __name__ == "__main__":
    proteomics_dim = 16
    clinical_dim = 4
    hidden_dims = [32, 32, 16]   # second block (32->32) exercises the residual add
    batch = 8

    key = jax.random.PRNGKey(0)
    key, k_x = jax.random.split(key)
    xp = jax.random.normal(k_x, (batch, proteomics_dim), jnp.float32)

    params = init_xc_predictor_params(key, proteomics_dim, clinical_dim, hidden_dims)

    xc_prob = xc_predictor_forward(params, xp)
    jax.block_until_ready(xc_prob)

    assert xc_prob.shape == (batch, clinical_dim)
    assert bool(jnp.all((xc_prob >= 0.0) & (xc_prob <= 1.0)))
    print("KERNEL_OK")
</pallas_src>

<mosaic_0001>
module attributes {stable_mosaic.version = 11 : i64} {
  func.func @_fused_xc_kernel(%arg0: memref<8x16xf32, #tpu.memory_space<vmem>>, %arg1: memref<4x32x32xbf16, #tpu.memory_space<vmem>>, %arg2: memref<1x32xf32, #tpu.memory_space<vmem>>, %arg3: memref<8x4xf32, #tpu.memory_space<vmem>>) attributes {dimension_semantics = [], scalar_prefetch = 0 : i64, scratch_operands = 0 : i64, tpu.core_type = #tpu.core_type<tc>} {
    %c0 = arith.constant 0 : index
    %c0_0 = arith.constant 0 : index
    %0 = vector.load %arg0[%c0, %c0_0] : memref<8x16xf32, #tpu.memory_space<vmem>>, vector<8x16xf32>
    %c0_1 = arith.constant 0 : index
    %c0_2 = arith.constant 0 : index
    %c0_3 = arith.constant 0 : index
    %1 = vector.load %arg1[%c0_1, %c0_2, %c0_3] : memref<4x32x32xbf16, #tpu.memory_space<vmem>>, vector<1x16x32xbf16>
    %2 = vector.shape_cast %1 : vector<1x16x32xbf16> to vector<16x32xbf16>
    %3 = arith.truncf %0 : vector<8x16xf32> to vector<8x16xbf16>
    %cst = arith.constant dense<0.000000e+00> : vector<8x32xf32>
    %4 = tpu.matmul %3, %2, %cst {dimension_numbers = #tpu.dot_dimension_numbers<[1], [0], [0], [1], [0, 0, 1, 1], [], []>} : vector<8x16xbf16>, vector<16x32xbf16>, vector<8x32xf32> -> vector<8x32xf32>
    %5 = arith.mulf %4, %4 : vector<8x32xf32>
    %6 = tpu.concatenate %4, %5 in 1 : vector<8x32xf32>, vector<8x32xf32> -> vector<8x64xf32>
    %cst_4 = arith.constant dense<0.000000e+00> : vector<64xf32>
    %7 = vector.multi_reduction <add>, %6, %cst_4 [0] : vector<8x64xf32> to vector<64xf32>
    %8 = vector.shape_cast %7 : vector<64xf32> to vector<1x64xf32>
    %9 = vector.extract_strided_slice %8 {offsets = [0, 0], sizes = [1, 32], strides = [1, 1]} : vector<1x64xf32> to vector<1x32xf32>
    %cst_5 = arith.constant 1.250000e-01 : f32
    %10 = vector.broadcast %cst_5 : f32 to vector<1x32xf32>
    %11 = arith.mulf %9, %10 : vector<1x32xf32>
    %12 = vector.extract_strided_slice %8 {offsets = [0, 32], sizes = [1, 32], strides = [1, 1]} : vector<1x64xf32> to vector<1x32xf32>
    %cst_6 = arith.constant 1.250000e-01 : f32
    %13 = vector.broadcast %cst_6 : f32 to vector<1x32xf32>
    %14 = arith.mulf %12, %13 : vector<1x32xf32>
    %15 = arith.mulf %11, %11 : vector<1x32xf32>
    %16 = arith.subf %14, %15 : vector<1x32xf32>
    %17 = vector.broadcast %11 : vector<1x32xf32> to vector<8x32xf32>
    %18 = arith.subf %4, %17 : vector<8x32xf32>
    %cst_7 = arith.constant 9.99999974E-6 : f32
    %19 = vector.broadcast %cst_7 : f32 to vector<1x32xf32>
    %20 = arith.addf %16, %19 : vector<1x32xf32>
    %21 = math.rsqrt %20 : vector<1x32xf32>
    %22 = vector.broadcast %21 : vector<1x32xf32> to vector<8x32xf32>
    %23 = arith.mulf %18, %22 : vector<8x32xf32>
    %cst_8 = arith.constant 0.000000e+00 : f32
    %24 = vector.broadcast %cst_8 : f32 to vector<8x32xf32>
    %25 = arith.maximumf %23, %24 : vector<8x32xf32>
    %c1 = arith.constant 1 : index
    %c0_9 = arith.constant 0 : index
    %c0_10 = arith.constant 0 : index
    %26 = vector.load %arg1[%c1, %c0_9, %c0_10] : memref<4x32x32xbf16, #tpu.memory_space<vmem>>, vector<1x32x32xbf16>
    %27 = vector.shape_cast %26 : vector<1x32x32xbf16> to vector<32x32xbf16>
    %28 = arith.truncf %25 : vector<8x32xf32> to vector<8x32xbf16>
    %cst_11 = arith.constant dense<0.000000e+00> : vector<8x32xf32>
    %29 = tpu.matmul %28, %27, %cst_11 {dimension_numbers = #tpu.dot_dimension_numbers<[1], [0], [0], [1], [0, 0, 1, 1], [], []>} : vector<8x32xbf16>, vector<32x32xbf16>, vector<8x32xf32> -> vector<8x32xf32>
    %30 = arith.mulf %29, %29 : vector<8x32xf32>
    %31 = tpu.concatenate %29, %30 in 1 : vector<8x32xf32>, vector<8x32xf32> -> vector<8x64xf32>
    %cst_12 = arith.constant dense<0.000000e+00> : vector<64xf32>
    %32 = vector.multi_reduction <add>, %31, %cst_12 [0] : vector<8x64xf32> to vector<64xf32>
    %33 = vector.shape_cast %32 : vector<64xf32> to vector<1x64xf32>
    %34 = vector.extract_strided_slice %33 {offsets = [0, 0], sizes = [1, 32], strides = [1, 1]} : vector<1x64xf32> to vector<1x32xf32>
    %cst_13 = arith.constant 1.250000e-01 : f32
    %35 = vector.broadcast %cst_13 : f32 to vector<1x32xf32>
    %36 = arith.mulf %34, %35 : vector<1x32xf32>
    %37 = vector.extract_strided_slice %33 {offsets = [0, 32], sizes = [1, 32], strides = [1, 1]} : vector<1x64xf32> to vector<1x32xf32>
    %cst_14 = arith.constant 1.250000e-01 : f32
    %38 = vector.broadcast %cst_14 : f32 to vector<1x32xf32>
    %39 = arith.mulf %37, %38 : vector<1x32xf32>
    %40 = arith.mulf %36, %36 : vector<1x32xf32>
    %41 = arith.subf %39, %40 : vector<1x32xf32>
    %42 = vector.broadcast %36 : vector<1x32xf32> to vector<8x32xf32>
    %43 = arith.subf %29, %42 : vector<8x32xf32>
    %cst_15 = arith.constant 9.99999974E-6 : f32
    %44 = vector.broadcast %cst_15 : f32 to vector<1x32xf32>
    %45 = arith.addf %41, %44 : vector<1x32xf32>
    %46 = math.rsqrt %45 : vector<1x32xf32>
    %47 = vector.broadcast %46 : vector<1x32xf32> to vector<8x32xf32>
    %48 = arith.mulf %43, %47 : vector<8x32xf32>
    %cst_16 = arith.constant 0.000000e+00 : f32
    %49 = vector.broadcast %cst_16 : f32 to vector<8x32xf32>
    %50 = arith.maximumf %48, %49 : vector<8x32xf32>
    %51 = arith.addf %50, %25 : vector<8x32xf32>
    %c2 = arith.constant 2 : index
    %c0_17 = arith.constant 0 : index
    %c0_18 = arith.constant 0 : index
    %52 = vector.load %arg1[%c2, %c0_17, %c0_18] : memref<4x32x32xbf16, #tpu.memory_space<vmem>>, vector<1x32x16xbf16>
    %53 = vector.shape_cast %52 : vector<1x32x16xbf16> to vector<32x16xbf16>
    %54 = arith.truncf %51 : vector<8x32xf32> to vector<8x32xbf16>
    %cst_19 = arith.constant dense<0.000000e+00> : vector<8x16xf32>
    %55 = tpu.matmul %54, %53, %cst_19 {dimension_numbers = #tpu.dot_dimension_numbers<[1], [0], [0], [1], [0, 0, 1, 1], [], []>} : vector<8x32xbf16>, vector<32x16xbf16>, vector<8x16xf32> -> vector<8x16xf32>
    %56 = arith.mulf %55, %55 : vector<8x16xf32>
    %57 = tpu.concatenate %55, %56 in 1 : vector<8x16xf32>, vector<8x16xf32> -> vector<8x32xf32>
    %cst_20 = arith.constant dense<0.000000e+00> : vector<32xf32>
    %58 = vector.multi_reduction <add>, %57, %cst_20 [0] : vector<8x32xf32> to vector<32xf32>
    %59 = vector.shape_cast %58 : vector<32xf32> to vector<1x32xf32>
    %60 = vector.extract_strided_slice %59 {offsets = [0, 0], sizes = [1, 16], strides = [1, 1]} : vector<1x32xf32> to vector<1x16xf32>
    %cst_21 = arith.constant 1.250000e-01 : f32
    %61 = vector.broadcast %cst_21 : f32 to vector<1x16xf32>
    %62 = arith.mulf %60, %61 : vector<1x16xf32>
    %63 = vector.extract_strided_slice %59 {offsets = [0, 16], sizes = [1, 16], strides = [1, 1]} : vector<1x32xf32> to vector<1x16xf32>
    %cst_22 = arith.constant 1.250000e-01 : f32
    %64 = vector.broadcast %cst_22 : f32 to vector<1x16xf32>
    %65 = arith.mulf %63, %64 : vector<1x16xf32>
    %66 = arith.mulf %62, %62 : vector<1x16xf32>
    %67 = arith.subf %65, %66 : vector<1x16xf32>
    %68 = vector.broadcast %62 : vector<1x16xf32> to vector<8x16xf32>
    %69 = arith.subf %55, %68 : vector<8x16xf32>
    %cst_23 = arith.constant 9.99999974E-6 : f32
    %70 = vector.broadcast %cst_23 : f32 to vector<1x16xf32>
    %71 = arith.addf %67, %70 : vector<1x16xf32>
    %72 = math.rsqrt %71 : vector<1x16xf32>
    %73 = vector.broadcast %72 : vector<1x16xf32> to vector<8x16xf32>
    %74 = arith.mulf %69, %73 : vector<8x16xf32>
    %cst_24 = arith.constant 0.000000e+00 : f32
    %75 = vector.broadcast %cst_24 : f32 to vector<8x16xf32>
    %76 = arith.maximumf %74, %75 : vector<8x16xf32>
    %c3 = arith.constant 3 : index
    %c0_25 = arith.constant 0 : index
    %c0_26 = arith.constant 0 : index
    %77 = vector.load %arg1[%c3, %c0_25, %c0_26] : memref<4x32x32xbf16, #tpu.memory_space<vmem>>, vector<1x16x4xbf16>
    %78 = vector.shape_cast %77 : vector<1x16x4xbf16> to vector<16x4xbf16>
    %79 = arith.truncf %76 : vector<8x16xf32> to vector<8x16xbf16>
    %cst_27 = arith.constant dense<0.000000e+00> : vector<8x4xf32>
    %80 = tpu.matmul %79, %78, %cst_27 {dimension_numbers = #tpu.dot_dimension_numbers<[1], [0], [0], [1], [0, 0, 1, 1], [], []>} : vector<8x16xbf16>, vector<16x4xbf16>, vector<8x4xf32> -> vector<8x4xf32>
    %c0_28 = arith.constant 0 : index
    %c0_29 = arith.constant 0 : index
    %81 = vector.load %arg2[%c0_28, %c0_29] : memref<1x32xf32, #tpu.memory_space<vmem>>, vector<1x4xf32>
    %82 = vector.broadcast %81 : vector<1x4xf32> to vector<8x4xf32>
    %83 = arith.addf %80, %82 : vector<8x4xf32>
    %84 = arith.negf %83 : vector<8x4xf32>
    %85 = math.exp %84 : vector<8x4xf32>
    %cst_30 = arith.constant 1.000000e+00 : f32
    %86 = vector.broadcast %cst_30 : f32 to vector<8x4xf32>
    %87 = arith.addf %86, %85 : vector<8x4xf32>
    %88 = arith.divf %86, %87 : vector<8x4xf32>
    %c0_31 = arith.constant 0 : index
    %c0_32 = arith.constant 0 : index
    %89 = vector.load %arg3[%c0_31, %c0_32] : memref<8x4xf32, #tpu.memory_space<vmem>>, vector<8x4xf32>
    tpu.vector_store %arg3[%c0_31, %c0_32], %88 {strides = array<i32>} : memref<8x4xf32, #tpu.memory_space<vmem>>, vector<8x4xf32>,
    return
  }
}

</mosaic_0001>

<llo_original>
// kernel: tpu_custom_call.1
$region0: #{tpu_custom_call.1}
  #allocation0 [shape = 'u32[]', space=smem, size = 0x4, offset = 0x4, fixed_abs, tag = 'smem constant byte address 0x4 - core index']
  #allocation1 [shape = 'u32[72,128]{1,0:T(1,128)}', space=vmem, size = 0x9000, scoped, tag = 'internal scratch']
  %s0 = inlined_call_operand.hbm [shape: f32[8,16], index: 0, kind: input, shape index: {}]
  %s1 = inlined_call_operand.hbm [shape: bf16[4,32,32], index: 1, kind: input, shape index: {}]
  %s2 = inlined_call_operand.vmem [shape: f32[1,32], index: 2, kind: input, shape index: {}]
  %s3 = inlined_call_operand.vmem [shape: f32[8,4], index: 3, kind: output, shape index: {}]
  %s4 = sld [smem:[#allocation0]]
  $region30: #{tpu_custom_call.1} parent=0
    _
  %s6 = ssub.s32 1, %s4
  %s7 = scalar_select 0, %s6, %s4
  $region1: #{tpu_custom_call.1} parent=0
    #allocation2 [shape = 'u8[4096]{0}', space=vmem, size = 0x1000, scoped, tag = 'input window, operand 0, single buffered']
    #allocation3 [shape = 's32[1]{0}', space=sflag, size = 0x4, scoped, tag = 'scoped memory for tpu_custom_call.1']
    #allocation4 [shape = 'u8[32768]{0}', space=vmem, size = 0x8000, scoped, tag = 'input window, operand 1, single buffered']
    #allocation5 [shape = 's32[1]{0}', space=sflag, size = 0x4, scoped, tag = 'scoped memory for tpu_custom_call.1']
    %8 = vsyncpa [#allocation3], 0
    %9 = vsyncpa [#allocation5], 0
    // Predicated region
    $region2: #{tpu_custom_call.1} parent=1 // pred_check
      _
    $region3: #{tpu_custom_call.1} parent=1 // pred_check_branch
      %11 = sbr.rel (0) target = $region5
    $region4: #{tpu_custom_call.1} parent=1 // pred_region
      %13 = vsyncadd [#allocation3], 0
      %s15 = sshll.u32 %s0, 4
      %s16 = int_to_ptr.hbm [resolvable:$true] %s15
      %s17 = sshll.u32 [#allocation2], 4
      %s18 = int_to_ptr.vmem [resolvable:$true] %s17
      %20 = dma.hbm_to_vmem [thread:$0]  %s16, 128, %s18, [#allocation3]
    $region5: #{tpu_custom_call.1} parent=1 // pred_fallthru
      _
    // Predicated region
    $region6: #{tpu_custom_call.1} parent=1 // pred_check
      _
    $region7: #{tpu_custom_call.1} parent=1 // pred_check_branch
      %22 = sbr.rel (0) target = $region9
    $region8: #{tpu_custom_call.1} parent=1 // pred_region
      %24 = vsyncadd [#allocation5], 0
      %s25 = sshll.u32 %s1, 4
      %s26 = int_to_ptr.hbm [resolvable:$true] %s25
      %s27 = sshll.u32 [#allocation4], 4
      %s28 = int_to_ptr.vmem [resolvable:$true] %s27
      %33 = dma.hbm_to_vmem [thread:$0]  %s26, 1024, %s28, [#allocation5], 64, 64, 4
    $region9: #{tpu_custom_call.1} parent=1 // pred_fallthru
      _
    // Predicated region
    $region10: #{tpu_custom_call.1} parent=1 // pred_check
      _
    $region11: #{tpu_custom_call.1} parent=1 // pred_check_branch
      %35 = sbr.rel (0) target = $region13
    $region12: #{tpu_custom_call.1} parent=1 // pred_region
      _
    $region13: #{tpu_custom_call.1} parent=1 // pred_fallthru
      _
    // Predicated region
    $region14: #{tpu_custom_call.1} parent=1 // pred_check
      _
    $region15: #{tpu_custom_call.1} parent=1 // pred_check_branch
      %37 = sbr.rel (0) target = $region17
    $region16: #{tpu_custom_call.1} parent=1 // pred_region
      %39 = dma.done [#allocation3], 128
    $region17: #{tpu_custom_call.1} parent=1 // pred_fallthru
      _
    // Predicated region
    $region18: #{tpu_custom_call.1} parent=1 // pred_check
      _
    $region19: #{tpu_custom_call.1} parent=1 // pred_check_branch
      %41 = sbr.rel (0) target = $region21
    $region20: #{tpu_custom_call.1} parent=1 // pred_region
      %43 = dma.done [#allocation5], 1024
    $region21: #{tpu_custom_call.1} parent=1 // pred_fallthru
      _
    %v45 = vld [vmem:[#allocation2] sm:$0xff]
    %v46 = vld [vmem:[#allocation4] sm:$0xf]
    %v47 = vld [vmem:[#allocation4 + $0x4] sm:$0xf]
    %v48 = vpack.c.bf16 %v45, %v45
    %v51 = vunpack.c.l.b16 %v46
    %v52 = vunpack.c.l.b16 %v47
    %v53 = vpack.c.b16 %v52, %v51
    %vm55 = vcmask 130048
    %v57 = vsel %vm55, %v48, 0
    %59 = vmatpush.bf16.msra.mxu0 0
    %60 = vmatpush.bf16.msra.mxu0 0
    %61 = vmatpush.bf16.msra.mxu0 0
    %62 = vmatpush.bf16.msra.mxu0 0
    %63 = vmatpush.bf16.msra.mxu0 0
    %64 = vmatpush.bf16.msra.mxu0 0
    %65 = vmatpush.bf16.msra.mxu0 0
    %66 = vmatpush.bf16.msra.mxu0 %v53
    %67 = vmatmul.bf16.gmra.mxu0 %v57
    %v68 = vpop.f32.mrf.mxu0
    %v69 = vadd.f32 0.0, %v68
    %v70 = vpop.f32.mrf.mxu0
    %71 = vdwg.mxu0
    %v72 = vmul.f32 %v69, %v69
    %74 = vrot.lane.b32.xlu0 %v72, 32
    %v75 = vpop.permute.xlu0 %74
    %vm77 = vcmask 261120
    %v78 = vsel %vm77, %v69, %v75
    %vm79 = vcmask 523264
    %v80 = vsel %vm79, %v78, 0.0
    %v81 = vrot.slane %v80, 4
    %v82 = vadd.f32 %v80, %v81
    %v83 = vrot.slane %v82, 2
    %v84 = vadd.f32 %v82, %v83
    %v85 = vrot.slane %v84, 1
    %v86 = vadd.f32 %v84, %v85
    %v87 = vmul.f32 %v86, 0.125
    %v88 = vmul.f32 %v87, %v87
    %90 = vrot.lane.b32.xlu0 %v88, 32
    %v91 = vpop.permute.xlu0 %90
    %v93 = vsub.f32 %v87, %v91
    %v94 = vsub.f32 %v69, %v87
    %v95 = vadd.f32 %v93, 1e-05
    %v96 = vrsqrt.pop %v95
    %v97 = vmul.f32 %v96, %v95
    %v98 = vmul.f32 %v97, %v96
    %v99 = vmul.f32 0.5, %v98
    %v100 = vsub.f32 1.5, %v99
    %v101 = vmul.f32 %v96, %v100
    %vm102 = vweird.f32 %v95
    %vm103 = vweird.f32 %v96
    %vm104 = vmor %vm102, %vm103
    %v105 = vsel %vm104, %v96, %v101
    %v106 = vperm.slane %v105, 0
    %108 = vrot.lane.b32.xlu0 %v106, 96
    %v109 = vpop.permute.xlu0 %108
    %v111 = vmul.f32 %v94, %v109
    %v112 = vmax.f32 %v111, 0.0
    %s113 = scalar_lea.vmem [#allocation4], 16
    %v114 = vld [vmem:[%s113] sm:$0xf]
    %v115 = vld [vmem:[%s113 + $0x4] sm:$0xf]
    %v116 = vld [vmem:[%s113 + $0x8] sm:$0xf]
    %v117 = vld [vmem:[%s113 + $0xc] sm:$0xf]
    %v118 = vpack.c.bf16 %v112, %v112
    %v123 = vunpack.c.l.b16 %v114
    %v124 = vunpack.c.l.b16 %v115
    %v125 = vunpack.c.l.b16 %v116
    %v126 = vunpack.c.l.b16 %v117
    %v127 = vpack.c.b16 %v124, %v123
    %v128 = vpack.c.b16 %v126, %v125
    %v132 = vsel %vm77, %v118, 0
    %134 = vmatpush.bf16.msra.mxu0 0
    %135 = vmatpush.bf16.msra.mxu0 0
    %136 = vmatpush.bf16.msra.mxu0 0
    %137 = vmatpush.bf16.msra.mxu0 0
    %138 = vmatpush.bf16.msra.mxu0 0
    %139 = vmatpush.bf16.msra.mxu0 0
    %140 = vmatpush.bf16.msra.mxu0 %v128
    %141 = vmatpush.bf16.msra.mxu0 %v127
    %142 = vmatmul.bf16.gmra.mxu0 %v132
    %v143 = vpop.f32.mrf.mxu0
    %v144 = vadd.f32 0.0, %v143
    %v145 = vpop.f32.mrf.mxu0
    %146 = vdwg.mxu0
    %v147 = vmul.f32 %v144, %v144
    %149 = vrot.lane.b32.xlu0 %v147, 32
    %v150 = vpop.permute.xlu0 %149
    %v152 = vsel %vm77, %v144, %v150
    %v153 = vsel %vm79, %v152, 0.0
    %v154 = vrot.slane %v153, 4
    %v155 = vadd.f32 %v153, %v154
    %v156 = vrot.slane %v155, 2
    %v157 = vadd.f32 %v155, %v156
    %v158 = vrot.slane %v157, 1
    %v159 = vadd.f32 %v157, %v158
    %v160 = vmul.f32 %v159, 0.125
    %v161 = vmul.f32 %v160, %v160
    %163 = vrot.lane.b32.xlu0 %v161, 32
    %v164 = vpop.permute.xlu0 %163
    %v166 = vsub.f32 %v160, %v164
    %v167 = vsub.f32 %v144, %v160
    %v168 = vadd.f32 %v166, 1e-05
    %v169 = vrsqrt.pop %v168
    %v170 = vmul.f32 %v169, %v168
    %v171 = vmul.f32 %v170, %v169
    %v172 = vmul.f32 0.5, %v171
    %v173 = vsub.f32 1.5, %v172
    %v174 = vmul.f32 %v169, %v173
    %vm175 = vweird.f32 %v168
    %vm176 = vweird.f32 %v169
    %vm177 = vmor %vm175, %vm176
    %v178 = vsel %vm177, %v169, %v174
    %v179 = vperm.slane %v178, 0
    %181 = vrot.lane.b32.xlu0 %v179, 96
    %v182 = vpop.permute.xlu0 %181
    %v184 = vmul.f32 %v167, %v182
    %v185 = vmax.f32 %v184, 0.0
    %v186 = vadd.f32 %v185, %v112
    %s187 = scalar_lea.vmem [#allocation4], 32
    %v188 = vld [vmem:[%s187] sm:$0xf]
    %v189 = vld [vmem:[%s187 + $0x4] sm:$0xf]
    %v190 = vld [vmem:[%s187 + $0x8] sm:$0xf]
    %v191 = vld [vmem:[%s187 + $0xc] sm:$0xf]
    %v192 = vpack.c.bf16 %v186, %v186
    %v197 = vunpack.c.l.b16 %v188
    %v198 = vunpack.c.l.b16 %v189
    %v199 = vunpack.c.l.b16 %v190
    %v200 = vunpack.c.l.b16 %v191
    %v201 = vpack.c.b16 %v198, %v197
    %v202 = vpack.c.b16 %v200, %v199
    %v206 = vsel %vm77, %v192, 0
    %208 = vmatpush.bf16.msra.mxu0 0
    %209 = vmatpush.bf16.msra.mxu0 0
    %210 = vmatpush.bf16.msra.mxu0 0
    %211 = vmatpush.bf16.msra.mxu0 0
    %212 = vmatpush.bf16.msra.mxu0 0
    %213 = vmatpush.bf16.msra.mxu0 0
    %214 = vmatpush.bf16.msra.mxu0 %v202
    %215 = vmatpush.bf16.msra.mxu0 %v201
    %216 = vmatmul.bf16.gmra.mxu0 %v206
    %v217 = vpop.f32.mrf.mxu0
    %v218 = vadd.f32 0.0, %v217
    %v219 = vpop.f32.mrf.mxu0
    %220 = vdwg.mxu0
    %v221 = vmul.f32 %v218, %v218
    %223 = vrot.lane.b32.xlu0 %v221, 16
    %v224 = vpop.permute.xlu0 %223
    %v226 = vsel %vm55, %v218, %v224
    %v227 = vsel %vm77, %v226, 0.0
    %v228 = vrot.slane %v227, 4
    %v229 = vadd.f32 %v227, %v228
    %v230 = vrot.slane %v229, 2
    %v231 = vadd.f32 %v229, %v230
    %v232 = vrot.slane %v231, 1
    %v233 = vadd.f32 %v231, %v232
    %v234 = vmul.f32 %v233, 0.125
    %v235 = vmul.f32 %v234, %v234
    %237 = vrot.lane.b32.xlu0 %v235, 16
    %v238 = vpop.permute.xlu0 %237
    %v240 = vsub.f32 %v234, %v238
    %v241 = vsub.f32 %v218, %v234
    %v242 = vadd.f32 %v240, 1e-05
    %v243 = vrsqrt.pop %v242
    %v244 = vmul.f32 %v243, %v242
    %v245 = vmul.f32 %v244, %v243
    %v246 = vmul.f32 0.5, %v245
    %v247 = vsub.f32 1.5, %v246
    %v248 = vmul.f32 %v243, %v247
    %vm249 = vweird.f32 %v242
    %vm250 = vweird.f32 %v243
    %vm251 = vmor %vm249, %vm250
    %v252 = vsel %vm251, %v243, %v248
    %v253 = vperm.slane %v252, 0
    %255 = vrot.lane.b32.xlu0 %v253, 112
    %v256 = vpop.permute.xlu0 %255
    %v258 = vmul.f32 %v241, %v256
    %v259 = vmax.f32 %v258, 0.0
    %s260 = scalar_lea.vmem [#allocation4], 48
    %v261 = vld [vmem:[%s260] sm:$0xf]
    %v262 = vld [vmem:[%s260 + $0x4] sm:$0xf]
    %v263 = vpack.c.bf16 %v259, %v259
    %v264 = vld [vmem:[%s2] sm:$0x1]
    %v266 = vperm.slane %v264, 0
    %v270 = vunpack.c.l.b16 %v261
    %v271 = vunpack.c.l.b16 %v262
    %v272 = vpack.c.b16 %v271, %v270
    %v275 = vsel %vm55, %v263, 0
    %277 = vmatpush.bf16.msra.mxu0 0
    %278 = vmatpush.bf16.msra.mxu0 0
    %279 = vmatpush.bf16.msra.mxu0 0
    %280 = vmatpush.bf16.msra.mxu0 0
    %281 = vmatpush.bf16.msra.mxu0 0
    %282 = vmatpush.bf16.msra.mxu0 0
    %283 = vmatpush.bf16.msra.mxu0 0
    %284 = vmatpush.bf16.msra.mxu0 %v272
    %285 = vmatmul.bf16.gmra.mxu0 %v275
    %v286 = vpop.f32.mrf.mxu0
    %v287 = vadd.f32 %v266, %v286
    %v288 = vpop.f32.mrf.mxu0
    %289 = vdwg.mxu0
    %v290 = vxor.u32 %v287, 2147483648
    %v291 = vmul.f32 %v290, 1.442695
    %v292 = vpow.pop %v291
    %v293 = vadd.f32 %v292, 1.0
    %v294 = vrcp.pop %v293
    %v295 = vmul.f32 %v293, %v294
    %v296 = vsub.f32 1.0, %v295
    %v297 = vmul.f32 %v294, %v296
    %v298 = vadd.f32 %v294, %v297
    %vm299 = vweird.f32 %v293
    %vm300 = vweird.f32 %v294
    %vm301 = vmor %vm299, %vm300
    %v302 = vsel %vm301, %v294, %v298
    %v303 = vand.u32 2147483647, %v293
    %vm304 = vcmp.eq.f32.partialorder %v303, 8.507059e+37
    %v305 = vand.u32 %v293, 2147483648
    %v306 = vor.u32 1.1754944e-38, %v305
    %v307 = vsel %vm304, %v306, %v302
    %v308 = vmul.f32 1.0, %v307
    %vm309 = vcmask 31744
    %310 = vst.msk [vmem:[%s3] sm:$0xff] %vm309, %v308
    // Predicated region
    $region22: #{tpu_custom_call.1} parent=1 // pred_check
      _
    $region23: #{tpu_custom_call.1} parent=1 // pred_check_branch
      %312 = sbr.rel (0) target = $region25
    $region24: #{tpu_custom_call.1} parent=1 // pred_region
      _
    $region25: #{tpu_custom_call.1} parent=1 // pred_fallthru
      _
    // Predicated region
    $region26: #{tpu_custom_call.1} parent=1 // pred_check
      _
    $region27: #{tpu_custom_call.1} parent=1 // pred_check_branch
      %314 = sbr.rel (0) target = $region29
    $region28: #{tpu_custom_call.1} parent=1 // pred_region
      _
    $region29: #{tpu_custom_call.1} parent=1 // pred_fallthru
      _
    %315 = vsyncpa [#allocation3], 1
    %316 = vsyncpa [#allocation5], 1

</llo_original>
